<compile_context>
chip_gen: v7x
topology: tpu7x:2x2x1
jax: 0.10.0
libtpu: 0.0.40
codegen_flags: <defaults>
</compile_context>

<pallas_src>
import jax
import jax.numpy as jnp
from jax.experimental import pallas as pl
from jax.experimental.pallas import tpu as pltpu


def fedp_attn_kernel(x_ref, wproj_ref, w0g_ref, wihr_ref, bias_ref,
                     wfc_ref, bfc_ref, out_ref):
    """One batch tile of the full FedPAttn forward pass.

    x_ref   : (TB, I)              f32
    wproj   : (I, 9H)              bf16  [Wih0(6H) | Wq(H) | Wk(H) | Wv(H)];
                                         Wih0 columns packed [i_f|i_b|o_f|o_b|g_f|g_b]
    w0g     : (H, 6H)              bf16  W0 @ Wih0  (attention out-proj folded into
                                         the layer-0 gate matmul)
    wihr    : (max(L-1,1), 2H, 6H) bf16  layers >= 1 fused (fwd+bwd) gate weights
    bias    : (L, 1, 6H)           f32   b_ih + b_hh, packed like Wih0
    wfc     : (2H, Opad)           bf16  final linear, transposed + lane-padded to 128
    bfc     : (1, Opad)            f32
    out_ref : (TB, Opad)           f32
    """
    x_bf = x_ref[...].astype(jnp.bfloat16)
    hsz = w0g_ref.shape[0]                         # H
    num_layers = bias_ref.shape[0]                 # L

    # ---- fused projection: attention Q/K/V and layer-0 gate contribution ----
    proj = jnp.dot(x_bf, wproj_ref[...], preferred_element_type=jnp.float32)  # (TB, 9H)
    xg0 = proj[:, :6 * hsz]                        # x @ Wih0 (lane-aligned at 0)
    q = proj[:, 6 * hsz:7 * hsz]
    k = proj[:, 7 * hsz:8 * hsz]
    v = proj[:, 8 * hsz:9 * hsz]

    # ---- self attention (seq_len == 1) ----
    # (q @ k^T) is a per-row scalar; scale /8 exactly as in the PyTorch source.
    score = jnp.sum(q * k, axis=-1, keepdims=True) * 0.125                    # (TB, 1)
    m_pre = score * v                                                         # (TB, H)
    # softmax over the hidden axis (torch.nn.Softmax(dim=2))
    m_max = jnp.max(m_pre, axis=-1, keepdims=True)
    m_exp = jnp.exp(m_pre - m_max)
    m = m_exp * pl.reciprocal(jnp.sum(m_exp, axis=-1, keepdims=True), approx=True)

    # layer-0 gates: (m@W0 + x) @ Wih0 + b  ==  m @ (W0@Wih0) + x @ Wih0 + b
    gates = jnp.dot(m.astype(jnp.bfloat16), w0g_ref[...],
                    preferred_element_type=jnp.float32) + xg0 + bias_ref[0]   # (TB, 6H)

    def lstm_cell(g):
        # columns are [i_f|i_b|o_f|o_b|g_f|g_b]; c_prev == 0 so the f-gate vanishes.
        sig = jax.nn.sigmoid(g[:, :4 * hsz])       # i and o gates (128 lanes at H=32)
        g_g = jnp.tanh(g[:, 4 * hsz:6 * hsz])      # [g_f | g_b]
        i_g = sig[:, :2 * hsz]
        o_g = sig[:, 2 * hsz:4 * hsz]
        c = i_g * g_g                               # f_g * c_prev == 0
        return o_g * jnp.tanh(c)                    # already [h_fwd | h_bwd]  (TB, 2H)

    u = lstm_cell(gates)
    for layer in range(1, num_layers):
        gates = jnp.dot(u.astype(jnp.bfloat16), wihr_ref[layer - 1],
                        preferred_element_type=jnp.float32) + bias_ref[layer]
        u = lstm_cell(gates)

    # ---- final linear (lane-dense padded output) + sigmoid ----
    logits = jnp.dot(u.astype(jnp.bfloat16), wfc_ref[...],
                     preferred_element_type=jnp.float32) + bfc_ref[...]       # (TB, Opad)
    out_ref[...] = jax.nn.sigmoid(logits).astype(out_ref.dtype)


def _pick_tile_b(b_total):
    if b_total <= 512:
        return b_total
    for t in (512, 256, 128):
        if b_total % t == 0:
            return t
    return b_total


def fedp_attn_forward(x, params, *, tile_b=None):
    """x: (B, input_size) float32 -> (B, out_features) float32."""
    wproj, w0g, wihr, bias, wfc, bfc = params
    b_total, in_size = x.shape
    hidden = w0g.shape[0]
    out_features = wfc.shape[1]
    num_layers = bias.shape[0]

    if tile_b is None:
        tile_b = _pick_tile_b(b_total)
    assert b_total % tile_b == 0, "batch must be divisible by the batch tile"

    # Lane-dense output: pad the fc to a multiple of 128 output lanes.
    o_pad = max(128, ((out_features + 127) // 128) * 128)
    wfc_p = jnp.pad(wfc, ((0, 0), (0, o_pad - out_features)))
    bfc_p = jnp.pad(bfc, ((0, 0), (0, o_pad - out_features)))

    def full(a):
        return pl.BlockSpec(a.shape, lambda i, _nd=a.ndim: (0,) * _nd)

    # Advisory cost estimate (helps XLA overlap this small kernel).
    flops = 2 * b_total * (
        in_size * 9 * hidden                       # fused qkv + layer-0 gate input
        + hidden * 6 * hidden                      # folded attention out-proj
        + (num_layers - 1) * 2 * hidden * 6 * hidden
        + 2 * hidden * o_pad                       # fc
    )
    transcendentals = b_total * (hidden + num_layers * 8 * hidden + o_pad + 1)
    bytes_accessed = (
        x.size * 4
        + sum(a.size * a.dtype.itemsize for a in (wproj, w0g, wihr, bias))
        + wfc_p.size * 2 + bfc_p.size * 4
        + b_total * o_pad * 4
    )

    out_padded = pl.pallas_call(
        fedp_attn_kernel,
        out_shape=jax.ShapeDtypeStruct((b_total, o_pad), jnp.float32),
        grid=(b_total // tile_b,),
        in_specs=[
            pl.BlockSpec((tile_b, in_size), lambda i: (i, 0)),   # x
            full(wproj), full(w0g), full(wihr), full(bias),
            full(wfc_p), full(bfc_p),
        ],
        out_specs=pl.BlockSpec((tile_b, o_pad), lambda i: (i, 0)),
        compiler_params=pltpu.CompilerParams(
            dimension_semantics=("parallel",)),
        cost_estimate=pl.CostEstimate(flops=flops,
                                      transcendentals=transcendentals,
                                      bytes_accessed=bytes_accessed),
    )(x, wproj, w0g, wihr, bias, wfc_p, bfc_p)

    return out_padded[:, :out_features]


def fedp_attn_reference(x, params):
    """Pure-jnp f32 reference on the packed parameters (for correctness check)."""
    wproj, w0g, wihr, bias, wfc, bfc = [a.astype(jnp.float32) for a in params]
    hsz = w0g.shape[0]
    proj = x @ wproj
    xg0 = proj[:, :6 * hsz]
    q = proj[:, 6 * hsz:7 * hsz]
    k = proj[:, 7 * hsz:8 * hsz]
    v = proj[:, 8 * hsz:9 * hsz]
    score = jnp.sum(q * k, axis=-1, keepdims=True) / 8.0
    m = jax.nn.softmax(score * v, axis=-1)
    gates = m @ w0g + xg0 + bias[0]

    def cell(g):
        i_g = jax.nn.sigmoid(g[:, :2 * hsz])
        o_g = jax.nn.sigmoid(g[:, 2 * hsz:4 * hsz])
        g_g = jnp.tanh(g[:, 4 * hsz:6 * hsz])
        return o_g * jnp.tanh(i_g * g_g)

    u = cell(gates)
    for layer in range(1, bias.shape[0]):
        u = cell(u @ wihr[layer - 1] + bias[layer])
    return jax.nn.sigmoid(u @ wfc + bfc)


def init_params(key, *, input_size, hidden_size, num_layers, out_features):
    """Deterministic synthetic parameters matching the PyTorch module shapes,
    repacked for the fused kernel (weights in bf16, biases in f32)."""
    keys = jax.random.split(key, 8)
    hsz = hidden_size

    # attention weights: N(0, 0.1), as in the PyTorch attention().
    wq = 0.1 * jax.random.normal(keys[0], (input_size, hsz), jnp.float32)
    wk = 0.1 * jax.random.normal(keys[1], (input_size, hsz), jnp.float32)
    wv = 0.1 * jax.random.normal(keys[2], (input_size, hsz), jnp.float32)
    w0 = 0.1 * jax.random.normal(keys[3], (hsz, input_size), jnp.float32)

    # LSTM weights: U(-1/sqrt(H), 1/sqrt(H)) like PyTorch default.
    bound = 1.0 / (hsz ** 0.5)
    lkey = keys[4]

    def uni(k, shape):
        return jax.random.uniform(k, shape, jnp.float32, -bound, bound)

    def pack_layer(w_fwd_t, w_bwd_t, b_fwd, b_bwd):
        # PyTorch column order after transpose is [i|f|g|o]; repack to
        # [i_f|i_b|o_f|o_b|g_f|g_b] and drop the forget gate (c_prev == 0).
        def wsplit(wt):
            return (wt[:, 0:hsz], wt[:, hsz:2 * hsz],
                    wt[:, 2 * hsz:3 * hsz], wt[:, 3 * hsz:4 * hsz])

        def bsplit(b):
            return (b[0:hsz], b[hsz:2 * hsz], b[2 * hsz:3 * hsz], b[3 * hsz:4 * hsz])

        i_f, _, g_f, o_f = wsplit(w_fwd_t)
        i_b, _, g_b, o_b = wsplit(w_bwd_t)
        bi_f, _, bg_f, bo_f = bsplit(b_fwd)
        bi_b, _, bg_b, bo_b = bsplit(b_bwd)
        w_packed = jnp.concatenate([i_f, i_b, o_f, o_b, g_f, g_b], axis=1)  # (in, 6H)
        b_packed = jnp.concatenate([bi_f, bi_b, bo_f, bo_b, bg_f, bg_b]
                                   ).reshape(1, 6 * hsz)
        return w_packed, b_packed

    wih0 = None
    wihr_list, bias_list = [], []
    for layer in range(num_layers):
        layer_in = input_size if layer == 0 else 2 * hsz
        per_dir_w, per_dir_b = [], []
        for _ in range(2):  # fwd, bwd
            lkey, k1, k2, k3 = jax.random.split(lkey, 4)
            w_ih = uni(k1, (4 * hsz, layer_in))          # PyTorch layout (4H, in)
            b_ih = uni(k2, (4 * hsz,))
            b_hh = uni(k3, (4 * hsz,))
            per_dir_w.append(jnp.transpose(w_ih))        # -> (in, 4H)
            per_dir_b.append(b_ih + b_hh)
        w_packed, b_packed = pack_layer(per_dir_w[0], per_dir_w[1],
                                        per_dir_b[0], per_dir_b[1])
        if layer == 0:
            wih0 = w_packed                              # (I, 6H)
        else:
            wihr_list.append(w_packed)                   # (2H, 6H)
        bias_list.append(b_packed)                       # (1, 6H)

    if wihr_list:
        wihr = jnp.stack(wihr_list, axis=0)              # (L-1, 2H, 6H)
    else:
        wihr = jnp.zeros((1, 2 * hsz, 6 * hsz), jnp.float32)   # unused dummy
    bias = jnp.stack(bias_list, axis=0)                  # (L, 1, 6H)

    # Fused projection [Wih0 | Wq | Wk | Wv] and folded out-projection W0 @ Wih0.
    wproj = jnp.concatenate([wih0, wq, wk, wv], axis=1)  # (I, 9H)
    w0g = w0 @ wih0                                      # (H, 6H)

    # final fc: Linear(2H, out_features), U(-1/sqrt(2H), 1/sqrt(2H))
    fbound = 1.0 / ((2 * hsz) ** 0.5)
    wfc = jax.random.uniform(keys[5], (out_features, 2 * hsz),
                             jnp.float32, -fbound, fbound)
    bfc = jax.random.uniform(keys[6], (out_features,), jnp.float32, -fbound, fbound)
    wfc = jnp.transpose(wfc)                             # (2H, O)
    bfc = bfc.reshape(1, out_features)

    # Weights to bf16 for the MXU (f32 accumulation in-kernel); biases stay f32.
    bf = lambda a: a.astype(jnp.bfloat16)
    return (bf(wproj), bf(w0g), bf(wihr), bias, bf(wfc), bfc)


if __name__ == "__main__":
    # Small shapes consistent with the module's forward pass.
    batch = 16
    input_size = 32
    hidden_size = 32
    num_layers = 2
    out_features = 8

    key = jax.random.PRNGKey(0)
    k_x, k_p = jax.random.split(key)
    x = jax.random.normal(k_x, (batch, input_size), jnp.float32)
    params = init_params(k_p, input_size=input_size, hidden_size=hidden_size,
                         num_layers=num_layers, out_features=out_features)

    run = jax.jit(fedp_attn_forward)
    out = jax.block_until_ready(run(x, params))
    ref = fedp_attn_reference(x, params)

    assert out.shape == (batch, out_features)
    assert bool(jnp.all(jnp.isfinite(out)))
    assert bool(jnp.allclose(out, ref, atol=2e-2, rtol=2e-2))
    print("KERNEL_OK")
</pallas_src>

<mosaic_0001>
module attributes {stable_mosaic.version = 11 : i64} {
  func.func @fedp_attn_kernel(%arg0: i32, %arg1: memref<16x32xf32, #tpu.memory_space<vmem>>, %arg2: memref<32x288xbf16, #tpu.memory_space<vmem>>, %arg3: memref<32x192xbf16, #tpu.memory_space<vmem>>, %arg4: memref<1x64x192xbf16, #tpu.memory_space<vmem>>, %arg5: memref<2x1x192xf32, #tpu.memory_space<vmem>>, %arg6: memref<64x128xbf16, #tpu.memory_space<vmem>>, %arg7: memref<1x128xf32, #tpu.memory_space<vmem>>, %arg8: memref<16x128xf32, #tpu.memory_space<vmem>>) attributes {dimension_semantics = [#tpu.dimension_semantics<parallel>], iteration_bounds = array<i64: 1>, scalar_prefetch = 0 : i64, scratch_operands = 0 : i64, tpu.core_type = #tpu.core_type<tc>, window_params = [{transform_indices = @transform_0, window_bounds = array<i64: 16, 32>}, {pipeline_mode = #tpu.pipeline_mode<synchronous>, transform_indices = @transform_1, window_bounds = array<i64: 32, 288>}, {pipeline_mode = #tpu.pipeline_mode<synchronous>, transform_indices = @transform_2, window_bounds = array<i64: 32, 192>}, {pipeline_mode = #tpu.pipeline_mode<synchronous>, transform_indices = @transform_3, window_bounds = array<i64: 1, 64, 192>}, {pipeline_mode = #tpu.pipeline_mode<synchronous>, transform_indices = @transform_4, window_bounds = array<i64: 2, 1, 192>}, {pipeline_mode = #tpu.pipeline_mode<synchronous>, transform_indices = @transform_5, window_bounds = array<i64: 64, 128>}, {pipeline_mode = #tpu.pipeline_mode<synchronous>, transform_indices = @transform_6, window_bounds = array<i64: 1, 128>}, {transform_indices = @transform_7, window_bounds = array<i64: 16, 128>}]} {
    %c0 = arith.constant 0 : index
    %c0_0 = arith.constant 0 : index
    %0 = vector.load %arg1[%c0, %c0_0] : memref<16x32xf32, #tpu.memory_space<vmem>>, vector<16x32xf32>
    %1 = arith.truncf %0 : vector<16x32xf32> to vector<16x32xbf16>
    %c0_1 = arith.constant 0 : index
    %c0_2 = arith.constant 0 : index
    %2 = vector.load %arg2[%c0_1, %c0_2] : memref<32x288xbf16, #tpu.memory_space<vmem>>, vector<32x288xbf16>
    %cst = arith.constant dense<0.000000e+00> : vector<16x288xf32>
    %3 = tpu.matmul %1, %2, %cst {dimension_numbers = #tpu.dot_dimension_numbers<[1], [0], [0], [1], [0, 0, 1, 1], [], []>} : vector<16x32xbf16>, vector<32x288xbf16>, vector<16x288xf32> -> vector<16x288xf32>
    %4 = vector.extract_strided_slice %3 {offsets = [0, 0], sizes = [16, 192], strides = [1, 1]} : vector<16x288xf32> to vector<16x192xf32>
    %5 = vector.extract_strided_slice %3 {offsets = [0, 192], sizes = [16, 32], strides = [1, 1]} : vector<16x288xf32> to vector<16x32xf32>
    %6 = vector.extract_strided_slice %3 {offsets = [0, 224], sizes = [16, 32], strides = [1, 1]} : vector<16x288xf32> to vector<16x32xf32>
    %7 = vector.extract_strided_slice %3 {offsets = [0, 256], sizes = [16, 32], strides = [1, 1]} : vector<16x288xf32> to vector<16x32xf32>
    %8 = arith.mulf %5, %6 : vector<16x32xf32>
    %cst_3 = arith.constant dense<0.000000e+00> : vector<16xf32>
    %9 = vector.multi_reduction <add>, %8, %cst_3 [1] : vector<16x32xf32> to vector<16xf32>
    %10 = vector.shape_cast %9 : vector<16xf32> to vector<16x1xf32>
    %cst_4 = arith.constant 1.250000e-01 : f32
    %11 = vector.broadcast %cst_4 : f32 to vector<16x1xf32>
    %12 = arith.mulf %10, %11 : vector<16x1xf32>
    %13 = vector.broadcast %12 : vector<16x1xf32> to vector<16x32xf32>
    %14 = arith.mulf %13, %7 : vector<16x32xf32>
    %cst_5 = arith.constant dense<0xFF800000> : vector<16xf32>
    %15 = vector.multi_reduction <maximumf>, %14, %cst_5 [1] : vector<16x32xf32> to vector<16xf32>
    %16 = vector.shape_cast %15 : vector<16xf32> to vector<16x1xf32>
    %17 = vector.broadcast %16 : vector<16x1xf32> to vector<16x32xf32>
    %18 = arith.subf %14, %17 : vector<16x32xf32>
    %19 = math.exp %18 : vector<16x32xf32>
    %cst_6 = arith.constant dense<0.000000e+00> : vector<16xf32>
    %20 = vector.multi_reduction <add>, %19, %cst_6 [1] : vector<16x32xf32> to vector<16xf32>
    %21 = vector.shape_cast %20 : vector<16xf32> to vector<16x1xf32>
    %22 = tpu.reciprocal %21 {approx = true} : vector<16x1xf32> -> vector<16x1xf32>
    %23 = vector.broadcast %22 : vector<16x1xf32> to vector<16x32xf32>
    %24 = arith.mulf %19, %23 : vector<16x32xf32>
    %25 = arith.truncf %24 : vector<16x32xf32> to vector<16x32xbf16>
    %c0_7 = arith.constant 0 : index
    %c0_8 = arith.constant 0 : index
    %26 = vector.load %arg3[%c0_7, %c0_8] : memref<32x192xbf16, #tpu.memory_space<vmem>>, vector<32x192xbf16>
    %cst_9 = arith.constant dense<0.000000e+00> : vector<16x192xf32>
    %27 = tpu.matmul %25, %26, %cst_9 {dimension_numbers = #tpu.dot_dimension_numbers<[1], [0], [0], [1], [0, 0, 1, 1], [], []>} : vector<16x32xbf16>, vector<32x192xbf16>, vector<16x192xf32> -> vector<16x192xf32>
    %28 = arith.addf %27, %4 : vector<16x192xf32>
    %c0_10 = arith.constant 0 : index
    %c0_11 = arith.constant 0 : index
    %c0_12 = arith.constant 0 : index
    %29 = vector.load %arg5[%c0_10, %c0_11, %c0_12] : memref<2x1x192xf32, #tpu.memory_space<vmem>>, vector<1x1x192xf32>
    %30 = vector.shape_cast %29 : vector<1x1x192xf32> to vector<1x192xf32>
    %31 = vector.broadcast %30 : vector<1x192xf32> to vector<16x192xf32>
    %32 = arith.addf %28, %31 : vector<16x192xf32>
    %33 = vector.extract_strided_slice %32 {offsets = [0, 0], sizes = [16, 128], strides = [1, 1]} : vector<16x192xf32> to vector<16x128xf32>
    %34 = arith.negf %33 : vector<16x128xf32>
    %35 = math.exp %34 : vector<16x128xf32>
    %cst_13 = arith.constant 1.000000e+00 : f32
    %36 = vector.broadcast %cst_13 : f32 to vector<16x128xf32>
    %37 = arith.addf %36, %35 : vector<16x128xf32>
    %38 = arith.divf %36, %37 : vector<16x128xf32>
    %39 = vector.extract_strided_slice %32 {offsets = [0, 128], sizes = [16, 64], strides = [1, 1]} : vector<16x192xf32> to vector<16x64xf32>
    %40 = math.tanh %39 : vector<16x64xf32>
    %41 = vector.extract_strided_slice %38 {offsets = [0, 0], sizes = [16, 64], strides = [1, 1]} : vector<16x128xf32> to vector<16x64xf32>
    %42 = vector.extract_strided_slice %38 {offsets = [0, 64], sizes = [16, 64], strides = [1, 1]} : vector<16x128xf32> to vector<16x64xf32>
    %43 = arith.mulf %41, %40 : vector<16x64xf32>
    %44 = math.tanh %43 : vector<16x64xf32>
    %45 = arith.mulf %42, %44 : vector<16x64xf32>
    %46 = arith.truncf %45 : vector<16x64xf32> to vector<16x64xbf16>
    %c0_14 = arith.constant 0 : index
    %c0_15 = arith.constant 0 : index
    %c0_16 = arith.constant 0 : index
    %47 = vector.load %arg4[%c0_14, %c0_15, %c0_16] : memref<1x64x192xbf16, #tpu.memory_space<vmem>>, vector<1x64x192xbf16>
    %48 = vector.shape_cast %47 : vector<1x64x192xbf16> to vector<64x192xbf16>
    %cst_17 = arith.constant dense<0.000000e+00> : vector<16x192xf32>
    %49 = tpu.matmul %46, %48, %cst_17 {dimension_numbers = #tpu.dot_dimension_numbers<[1], [0], [0], [1], [0, 0, 1, 1], [], []>} : vector<16x64xbf16>, vector<64x192xbf16>, vector<16x192xf32> -> vector<16x192xf32>
    %c1 = arith.constant 1 : index
    %c0_18 = arith.constant 0 : index
    %c0_19 = arith.constant 0 : index
    %50 = vector.load %arg5[%c1, %c0_18, %c0_19] : memref<2x1x192xf32, #tpu.memory_space<vmem>>, vector<1x1x192xf32>
    %51 = vector.shape_cast %50 : vector<1x1x192xf32> to vector<1x192xf32>
    %52 = vector.broadcast %51 : vector<1x192xf32> to vector<16x192xf32>
    %53 = arith.addf %49, %52 : vector<16x192xf32>
    %54 = vector.extract_strided_slice %53 {offsets = [0, 0], sizes = [16, 128], strides = [1, 1]} : vector<16x192xf32> to vector<16x128xf32>
    %55 = arith.negf %54 : vector<16x128xf32>
    %56 = math.exp %55 : vector<16x128xf32>
    %cst_20 = arith.constant 1.000000e+00 : f32
    %57 = vector.broadcast %cst_20 : f32 to vector<16x128xf32>
    %58 = arith.addf %57, %56 : vector<16x128xf32>
    %59 = arith.divf %57, %58 : vector<16x128xf32>
    %60 = vector.extract_strided_slice %53 {offsets = [0, 128], sizes = [16, 64], strides = [1, 1]} : vector<16x192xf32> to vector<16x64xf32>
    %61 = math.tanh %60 : vector<16x64xf32>
    %62 = vector.extract_strided_slice %59 {offsets = [0, 0], sizes = [16, 64], strides = [1, 1]} : vector<16x128xf32> to vector<16x64xf32>
    %63 = vector.extract_strided_slice %59 {offsets = [0, 64], sizes = [16, 64], strides = [1, 1]} : vector<16x128xf32> to vector<16x64xf32>
    %64 = arith.mulf %62, %61 : vector<16x64xf32>
    %65 = math.tanh %64 : vector<16x64xf32>
    %66 = arith.mulf %63, %65 : vector<16x64xf32>
    %67 = arith.truncf %66 : vector<16x64xf32> to vector<16x64xbf16>
    %c0_21 = arith.constant 0 : index
    %c0_22 = arith.constant 0 : index
    %68 = vector.load %arg6[%c0_21, %c0_22] : memref<64x128xbf16, #tpu.memory_space<vmem>>, vector<64x128xbf16>
    %cst_23 = arith.constant dense<0.000000e+00> : vector<16x128xf32>
    %69 = tpu.matmul %67, %68, %cst_23 {dimension_numbers = #tpu.dot_dimension_numbers<[1], [0], [0], [1], [0, 0, 1, 1], [], []>} : vector<16x64xbf16>, vector<64x128xbf16>, vector<16x128xf32> -> vector<16x128xf32>
    %c0_24 = arith.constant 0 : index
    %c0_25 = arith.constant 0 : index
    %70 = vector.load %arg7[%c0_24, %c0_25] : memref<1x128xf32, #tpu.memory_space<vmem>>, vector<1x128xf32>
    %71 = vector.broadcast %70 : vector<1x128xf32> to vector<16x128xf32>
    %72 = arith.addf %69, %71 : vector<16x128xf32>
    %73 = arith.negf %72 : vector<16x128xf32>
    %74 = math.exp %73 : vector<16x128xf32>
    %cst_26 = arith.constant 1.000000e+00 : f32
    %75 = vector.broadcast %cst_26 : f32 to vector<16x128xf32>
    %76 = arith.addf %75, %74 : vector<16x128xf32>
    %77 = arith.divf %75, %76 : vector<16x128xf32>
    %c0_27 = arith.constant 0 : index
    %c0_28 = arith.constant 0 : index
    %78 = vector.load %arg8[%c0_27, %c0_28] : memref<16x128xf32, #tpu.memory_space<vmem>>, vector<16x128xf32>
    tpu.vector_store %arg8[%c0_27, %c0_28], %77 {strides = array<i32>} : memref<16x128xf32, #tpu.memory_space<vmem>>, vector<16x128xf32>,
    return
  }
  func.func @transform_0(%arg0: i32) -> (i32, i32) {
    %c0_i32 = arith.constant 0 : i32
    %c0_i32_0 = arith.constant 0 : i32
    return %arg0, %c0_i32 : i32, i32
  }
  func.func @transform_1(%arg0: i32) -> (i32, i32) {
    %c0_i32 = arith.constant 0 : i32
    %c0_i32_0 = arith.constant 0 : i32
    %c0_i32_1 = arith.constant 0 : i32
    return %c0_i32, %c0_i32_0 : i32, i32
  }
  func.func @transform_2(%arg0: i32) -> (i32, i32) {
    %c0_i32 = arith.constant 0 : i32
    %c0_i32_0 = arith.constant 0 : i32
    %c0_i32_1 = arith.constant 0 : i32
    return %c0_i32, %c0_i32_0 : i32, i32
  }
  func.func @transform_3(%arg0: i32) -> (i32, i32, i32) {
    %c0_i32 = arith.constant 0 : i32
    %c0_i32_0 = arith.constant 0 : i32
    %c0_i32_1 = arith.constant 0 : i32
    %c0_i32_2 = arith.constant 0 : i32
    return %c0_i32, %c0_i32_0, %c0_i32_1 : i32, i32, i32
  }
  func.func @transform_4(%arg0: i32) -> (i32, i32, i32) {
    %c0_i32 = arith.constant 0 : i32
    %c0_i32_0 = arith.constant 0 : i32
    %c0_i32_1 = arith.constant 0 : i32
    %c0_i32_2 = arith.constant 0 : i32
    return %c0_i32, %c0_i32_0, %c0_i32_1 : i32, i32, i32
  }
  func.func @transform_5(%arg0: i32) -> (i32, i32) {
    %c0_i32 = arith.constant 0 : i32
    %c0_i32_0 = arith.constant 0 : i32
    %c0_i32_1 = arith.constant 0 : i32
    return %c0_i32, %c0_i32_0 : i32, i32
  }
  func.func @transform_6(%arg0: i32) -> (i32, i32) {
    %c0_i32 = arith.constant 0 : i32
    %c0_i32_0 = arith.constant 0 : i32
    %c0_i32_1 = arith.constant 0 : i32
    return %c0_i32, %c0_i32_0 : i32, i32
  }
  func.func @transform_7(%arg0: i32) -> (i32, i32) {
    %c0_i32 = arith.constant 0 : i32
    %c0_i32_0 = arith.constant 0 : i32
    return %arg0, %c0_i32 : i32, i32
  }
}

</mosaic_0001>

<llo_original>
// kernel: fedp_attn_forward.1
$region0: #{fedp_attn_forward.1}
  #allocation0 [shape = 'u32[]', space=smem, size = 0x4, offset = 0x4, fixed_abs, tag = 'smem constant byte address 0x4 - core index']
  #allocation1 [shape = 'u32[144,128]{1,0:T(1,128)}', space=vmem, size = 0x12000, scoped, tag = 'internal scratch']
  %s0 = inlined_call_operand.hbm [shape: f32[16,32], index: 0, kind: input, shape index: {}]
  %s1 = inlined_call_operand.vmem [shape: bf16[32,288], index: 1, kind: input, shape index: {}]
  %s2 = inlined_call_operand.hbm [shape: bf16[32,192], index: 2, kind: input, shape index: {}]
  %s3 = inlined_call_operand.vmem [shape: bf16[1,64,192], index: 3, kind: input, shape index: {}]
  %s4 = inlined_call_operand.hbm [shape: f32[2,1,192], index: 4, kind: input, shape index: {}]
  %s5 = inlined_call_operand.vmem [shape: bf16[64,128], index: 5, kind: input, shape index: {}]
  %s6 = inlined_call_operand.vmem [shape: f32[1,128], index: 6, kind: input, shape index: {}]
  %s7 = inlined_call_operand.vmem [shape: f32[16,128], index: 7, kind: output, shape index: {}]
  %s8 = sld [smem:[#allocation0]]
  $region50: #{fedp_attn_forward.1} parent=0
    _
  %s10 = ssub.s32 1, %s8
  %s11 = scalar_select 0, %s10, %s8
  $region1: #{fedp_attn_forward.1} parent=0
    #allocation2 [shape = 'u8[8192]{0}', space=vmem, size = 0x2000, scoped, tag = 'input window, operand 0, single buffered']
    #allocation3 [shape = 's32[1]{0}', space=sflag, size = 0x4, scoped, tag = 'scoped memory for fedp_attn_forward.1']
    #allocation4 [shape = 'u8[16384]{0}', space=vmem, size = 0x4000, scoped, tag = 'input window, operand 2, single buffered']
    #allocation5 [shape = 's32[1]{0}', space=sflag, size = 0x4, scoped, tag = 'scoped memory for fedp_attn_forward.1']
    #allocation6 [shape = 'u8[2048]{0}', space=vmem, size = 0x800, scoped, tag = 'input window, operand 4, single buffered']
    %12 = vsyncpa [#allocation3], 0
    %13 = vsyncpa [#allocation5], 0
    // Predicated region
    $region2: #{fedp_attn_forward.1} parent=1 // pred_check
      _
    $region3: #{fedp_attn_forward.1} parent=1 // pred_check_branch
      %15 = sbr.rel (0) target = $region5
    $region4: #{fedp_attn_forward.1} parent=1 // pred_region
      %s17 = ssub.s32 256, 256
      %18 = vsyncadd [#allocation3], %s17
      %s19 = sshll.u32 [#allocation2], 4
      %s20 = int_to_ptr.vmem [resolvable:$true] %s19
      %25 = dma.hbm_to_vmem [thread:$0]  %s0, 256, %s20, [#allocation3], 128, 128, 8
    $region5: #{fedp_attn_forward.1} parent=1 // pred_fallthru
      _
    // Predicated region
    $region6: #{fedp_attn_forward.1} parent=1 // pred_check
      _
    $region7: #{fedp_attn_forward.1} parent=1 // pred_check_branch
      %27 = sbr.rel (0) target = $region9
    $region8: #{fedp_attn_forward.1} parent=1 // pred_region
      _
    $region9: #{fedp_attn_forward.1} parent=1 // pred_fallthru
      _
    // Predicated region
    $region10: #{fedp_attn_forward.1} parent=1 // pred_check
      _
    $region11: #{fedp_attn_forward.1} parent=1 // pred_check_branch
      %29 = sbr.rel (0) target = $region13
    $region12: #{fedp_attn_forward.1} parent=1 // pred_region
      %s31 = ssub.s32 512, 512
      %32 = vsyncadd [#allocation5], %s31
      %s33 = sshll.u32 [#allocation4], 4
      %s34 = int_to_ptr.vmem [resolvable:$true] %s33
      %39 = dma.hbm_to_vmem [thread:$0]  %s2, 512, %s34, [#allocation5], 128, 128, 8
    $region13: #{fedp_attn_forward.1} parent=1 // pred_fallthru
      _
    // Predicated region
    $region14: #{fedp_attn_forward.1} parent=1 // pred_check
      _
    $region15: #{fedp_attn_forward.1} parent=1 // pred_check_branch
      %41 = sbr.rel (0) target = $region17
    $region16: #{fedp_attn_forward.1} parent=1 // pred_region
      _
    $region17: #{fedp_attn_forward.1} parent=1 // pred_fallthru
      _
    // Predicated region
    $region18: #{fedp_attn_forward.1} parent=1 // pred_check
      _
    $region19: #{fedp_attn_forward.1} parent=1 // pred_check_branch
      %43 = sbr.rel (0) target = $region21
    $region20: #{fedp_attn_forward.1} parent=1 // pred_region
      %s45 = ssub.s32 64, 64
      %46 = vsyncadd [#allocation5], %s45
      %s47 = sshll.u32 [#allocation6], 4
      %s48 = int_to_ptr.vmem [resolvable:$true] %s47
      %53 = dma.hbm_to_vmem [thread:$0]  %s4, 64, %s48, [#allocation5], 32, 32, 2
    $region21: #{fedp_attn_forward.1} parent=1 // pred_fallthru
      _
    // Predicated region
    $region22: #{fedp_attn_forward.1} parent=1 // pred_check
      _
    $region23: #{fedp_attn_forward.1} parent=1 // pred_check_branch
      %55 = sbr.rel (0) target = $region25
    $region24: #{fedp_attn_forward.1} parent=1 // pred_region
      _
    $region25: #{fedp_attn_forward.1} parent=1 // pred_fallthru
      _
    // Predicated region
    $region26: #{fedp_attn_forward.1} parent=1 // pred_check
      _
    $region27: #{fedp_attn_forward.1} parent=1 // pred_check_branch
      %57 = sbr.rel (0) target = $region29
    $region28: #{fedp_attn_forward.1} parent=1 // pred_region
      _
    $region29: #{fedp_attn_forward.1} parent=1 // pred_fallthru
      _
    // Predicated region
    $region30: #{fedp_attn_forward.1} parent=1 // pred_check
      _
    $region31: #{fedp_attn_forward.1} parent=1 // pred_check_branch
      %59 = sbr.rel (0) target = $region33
    $region32: #{fedp_attn_forward.1} parent=1 // pred_region
      %60 = dma.done [#allocation3], 256
    $region33: #{fedp_attn_forward.1} parent=1 // pred_fallthru
      _
    // Predicated region
    $region34: #{fedp_attn_forward.1} parent=1 // pred_check
      _
    $region35: #{fedp_attn_forward.1} parent=1 // pred_check_branch
      %62 = sbr.rel (0) target = $region37
    $region36: #{fedp_attn_forward.1} parent=1 // pred_region
      %63 = dma.done [#allocation5], 512
    $region37: #{fedp_attn_forward.1} parent=1 // pred_fallthru
      _
    // Predicated region
    $region38: #{fedp_attn_forward.1} parent=1 // pred_check
      _
    $region39: #{fedp_attn_forward.1} parent=1 // pred_check_branch
      %65 = sbr.rel (0) target = $region41
    $region40: #{fedp_attn_forward.1} parent=1 // pred_region
      %66 = dma.done [#allocation5], 64
    $region41: #{fedp_attn_forward.1} parent=1 // pred_fallthru
      _
    %v68 = vld [vmem:[#allocation2] sm:$0xff]
    %v69 = vld [vmem:[#allocation2 + $0x8] sm:$0xff]
    %v70 = vpack.c.bf16 %v69, %v68
    %v71 = vld [vmem:[%s1] sm:$0xff]
    %v72 = vld [vmem:[%s1 + $0x8] sm:$0xf]
    %v73 = vld [vmem:[%s1 + $0xc] sm:$0xff]
    %v74 = vld [vmem:[%s1 + $0x14] sm:$0xf]
    %v75 = vld [vmem:[%s1 + $0x18] sm:$0xff]
    %v76 = vld [vmem:[%s1 + $0x20] sm:$0xf]
    %v77 = vld [vmem:[%s1 + $0x24] sm:$0xff]
    %v78 = vld [vmem:[%s1 + $0x2c] sm:$0xf]
    %v87 = vunpack.c.l.b16 %v71
    %v88 = vunpack.c.h.b16 %v71
    %v89 = vunpack.c.l.b16 %v72
    %v90 = vunpack.c.l.b16 %v73
    %v91 = vunpack.c.h.b16 %v73
    %v92 = vunpack.c.l.b16 %v74
    %v93 = vunpack.c.l.b16 %v75
    %v94 = vunpack.c.h.b16 %v75
    %v95 = vunpack.c.l.b16 %v76
    %v96 = vunpack.c.l.b16 %v77
    %v97 = vunpack.c.h.b16 %v77
    %v98 = vunpack.c.l.b16 %v78
    %v99 = vpack.c.b16 %v90, %v87
    %v100 = vpack.c.b16 %v91, %v88
    %v101 = vpack.c.b16 %v92, %v89
    %v102 = vpack.c.b16 %v96, %v93
    %v103 = vpack.c.b16 %v97, %v94
    %v104 = vpack.c.b16 %v98, %v95
    %vm111 = vcmask 261120
    %v113 = vsel %vm111, %v70, 0
    %115 = vmatprep.subr.bf16.mxu0 %v100
    %116 = vmatpush1.bf16.msra.mxu0 %v99
    %117 = vmatprep.subr.bf16.mxu0 %v103
    %118 = vmatpush1.bf16.msra.mxu0 %v102
    %119 = vmatprep.subr.bf16.mxu0 0
    %120 = vmatpush1.bf16.msra.mxu0 0
    %121 = vmatprep.subr.bf16.mxu0 0
    %122 = vmatpush1.bf16.msra.mxu0 0
    %123 = vmatprep.subr.bf16.mxu0 0
    %124 = vmatpush1.bf16.msra.mxu0 0
    %125 = vmatprep.subr.bf16.mxu0 0
    %126 = vmatpush1.bf16.msra.mxu0 0
    %127 = vmatprep.subr.bf16.mxu0 0
    %128 = vmatpush1.bf16.msra.mxu0 0
    %129 = vmatprep.subr.bf16.mxu0 0
    %130 = vmatpush1.bf16.msra.mxu0 0
    %131 = vmatprep.subr.bf16.mxu0 0
    %132 = vmatpush1.bf16.msra.mxu0 0
    %133 = vmatprep.subr.bf16.mxu0 0
    %134 = vmatpush1.bf16.msra.mxu0 0
    %135 = vmatprep.subr.bf16.mxu0 0
    %136 = vmatpush1.bf16.msra.mxu0 0
    %137 = vmatprep.subr.bf16.mxu0 0
    %138 = vmatpush1.bf16.msra.mxu0 0
    %139 = vmatprep.subr.bf16.mxu0 0
    %140 = vmatpush1.bf16.msra.mxu0 0
    %141 = vmatprep.subr.bf16.mxu0 0
    %142 = vmatpush1.bf16.msra.mxu0 0
    %143 = vmatprep.subr.bf16.mxu0 0
    %144 = vmatpush1.bf16.msra.mxu0 0
    %145 = vmatprep.subr.bf16.mxu0 0
    %146 = vmatpush1.bf16.msra.mxu0 0
    %147 = vmatprep.mubr.bf16.mxu0 0
    %148 = vmatmul.mubr.bf16.gmra.mrb[0].mxu0 %v113
    %v149 = vpop.f32.mrb[0].mxu0
    %v150 = vadd.f32 0.0, %v149
    %v151 = vpop.f32.mrb[0].mxu0
    %v152 = vadd.f32 0.0, %v151
    %v153 = vpop.f32.mrb[0].mxu0
    %v154 = vadd.f32 0.0, %v153
    %v155 = vpop.f32.mrb[0].mxu0
    %v156 = vadd.f32 0.0, %v155
    %157 = vdwg.mxu0
    %158 = vmatprep.subr.bf16.mxu0 0
    %159 = vmatpush1.bf16.msra.mxu0 %v101
    %160 = vmatprep.subr.bf16.mxu0 0
    %161 = vmatpush1.bf16.msra.mxu0 %v104
    %162 = vmatprep.subr.bf16.mxu0 0
    %163 = vmatpush1.bf16.msra.mxu0 0
    %164 = vmatprep.subr.bf16.mxu0 0
    %165 = vmatpush1.bf16.msra.mxu0 0
    %166 = vmatprep.subr.bf16.mxu0 0
    %167 = vmatpush1.bf16.msra.mxu0 0
    %168 = vmatprep.subr.bf16.mxu0 0
    %169 = vmatpush1.bf16.msra.mxu0 0
    %170 = vmatprep.subr.bf16.mxu0 0
    %171 = vmatpush1.bf16.msra.mxu0 0
    %172 = vmatprep.subr.bf16.mxu0 0
    %173 = vmatpush1.bf16.msra.mxu0 0
    %174 = vmatprep.subr.bf16.mxu0 0
    %175 = vmatpush1.bf16.msra.mxu0 0
    %176 = vmatprep.subr.bf16.mxu0 0
    %177 = vmatpush1.bf16.msra.mxu0 0
    %178 = vmatprep.subr.bf16.mxu0 0
    %179 = vmatpush1.bf16.msra.mxu0 0
    %180 = vmatprep.subr.bf16.mxu0 0
    %181 = vmatpush1.bf16.msra.mxu0 0
    %182 = vmatprep.subr.bf16.mxu0 0
    %183 = vmatpush1.bf16.msra.mxu0 0
    %184 = vmatprep.subr.bf16.mxu0 0
    %185 = vmatpush1.bf16.msra.mxu0 0
    %186 = vmatprep.subr.bf16.mxu0 0
    %187 = vmatpush1.bf16.msra.mxu0 0
    %188 = vmatprep.subr.bf16.mxu0 0
    %189 = vmatpush1.bf16.msra.mxu0 0
    %190 = vmatprep.mubr.bf16.mxu0 0
    %191 = vmatmul.mubr.bf16.gmra.mrb[0].mxu0 %v113
    %v192 = vpop.f32.mrb[0].mxu0
    %v193 = vadd.f32 0.0, %v192
    %v194 = vpop.f32.mrb[0].mxu0
    %v195 = vpop.f32.mrb[0].mxu0
    %v196 = vadd.f32 0.0, %v195
    %v197 = vpop.f32.mrb[0].mxu0
    %198 = vdwg.mxu0
    %201 = vrot.lane.b32.xlu0 %v152, 96
    %v202 = vpop.permute.xlu0 %201
    %203 = vrot.lane.b32.xlu0 %v156, 96
    %v204 = vpop.permute.xlu0 %203
    %v207 = vmul.f32 %v152, %v202
    %v208 = vmul.f32 %v156, %v204
    %211 = vrot.lane.b32.xlu0 %v207, 64
    %v212 = vpop.permute.xlu0 %211
    %213 = vrot.lane.b32.xlu0 %v208, 64
    %v214 = vpop.permute.xlu0 %213
    %v217 = vsel %vm111, %v212, 0.0
    %218 = vadd.xlane.f32.xlu0 %v217
    %v219 = vpop.xlane.xlu0 %218
    %v220 = vsel %vm111, %v214, 0.0
    %221 = vadd.xlane.f32.xlu0 %v220
    %v222 = vpop.xlane.xlu0 %221
    %v223 = vmul.f32 %v219, 0.125
    %v224 = vmul.f32 %v222, 0.125
    %v225 = vmul.f32 %v223, %v193
    %v226 = vmul.f32 %v224, %v196
    %v227 = vsel %vm111, %v225, -inf
    %228 = vmax.xlane.f32.xlu0 %v227
    %v229 = vpop.xlane.xlu0 %228
    %v230 = vsel %vm111, %v226, -inf
    %231 = vmax.xlane.f32.xlu0 %v230
    %v232 = vpop.xlane.xlu0 %231
    %v233 = vsub.f32 %v225, %v229
    %v234 = vsub.f32 %v226, %v232
    %v235 = vmul.f32 %v233, 1.442695
    %v236 = vpow.pop %v235
    %v237 = vmul.f32 %v234, 1.442695
    %v238 = vpow.pop %v237
    %v239 = vsel %vm111, %v236, 0.0
    %240 = vadd.xlane.f32.xlu0 %v239
    %v241 = vpop.xlane.xlu0 %240
    %v242 = vsel %vm111, %v238, 0.0
    %243 = vadd.xlane.f32.xlu0 %v242
    %v244 = vpop.xlane.xlu0 %243
    %v245 = vrcp.pop %v241
    %v246 = vrcp.pop %v244
    %v247 = vmul.f32 %v236, %v245
    %v248 = vmul.f32 %v238, %v246
    %v249 = vpack.c.bf16 %v248, %v247
    %v250 = vld [vmem:[#allocation4] sm:$0xff]
    %v251 = vld [vmem:[#allocation4 + $0x8] sm:$0xff]
    %v252 = vld [vmem:[#allocation4 + $0x10] sm:$0xff]
    %v253 = vld [vmem:[#allocation4 + $0x18] sm:$0xff]
    %v258 = vunpack.c.l.b16 %v250
    %v259 = vunpack.c.h.b16 %v250
    %v260 = vunpack.c.l.b16 %v251
    %v261 = vunpack.c.h.b16 %v251
    %v262 = vunpack.c.l.b16 %v252
    %v263 = vunpack.c.h.b16 %v252
    %v264 = vunpack.c.l.b16 %v253
    %v265 = vunpack.c.h.b16 %v253
    %v266 = vpack.c.b16 %v260, %v258
    %v267 = vpack.c.b16 %v261, %v259
    %v268 = vpack.c.b16 %v264, %v262
    %v269 = vpack.c.b16 %v265, %v263
    %v275 = vsel %vm111, %v249, 0
    %277 = vmatprep.subr.bf16.mxu0 %v267
    %278 = vmatpush1.bf16.msra.mxu0 %v266
    %279 = vmatprep.subr.bf16.mxu0 %v269
    %280 = vmatpush1.bf16.msra.mxu0 %v268
    %281 = vmatprep.subr.bf16.mxu0 0
    %282 = vmatpush1.bf16.msra.mxu0 0
    %283 = vmatprep.subr.bf16.mxu0 0
    %284 = vmatpush1.bf16.msra.mxu0 0
    %285 = vmatprep.subr.bf16.mxu0 0
    %286 = vmatpush1.bf16.msra.mxu0 0
    %287 = vmatprep.subr.bf16.mxu0 0
    %288 = vmatpush1.bf16.msra.mxu0 0
    %289 = vmatprep.subr.bf16.mxu0 0
    %290 = vmatpush1.bf16.msra.mxu0 0
    %291 = vmatprep.subr.bf16.mxu0 0
    %292 = vmatpush1.bf16.msra.mxu0 0
    %293 = vmatprep.subr.bf16.mxu0 0
    %294 = vmatpush1.bf16.msra.mxu0 0
    %295 = vmatprep.subr.bf16.mxu0 0
    %296 = vmatpush1.bf16.msra.mxu0 0
    %297 = vmatprep.subr.bf16.mxu0 0
    %298 = vmatpush1.bf16.msra.mxu0 0
    %299 = vmatprep.subr.bf16.mxu0 0
    %300 = vmatpush1.bf16.msra.mxu0 0
    %301 = vmatprep.subr.bf16.mxu0 0
    %302 = vmatpush1.bf16.msra.mxu0 0
    %303 = vmatprep.subr.bf16.mxu0 0
    %304 = vmatpush1.bf16.msra.mxu0 0
    %305 = vmatprep.subr.bf16.mxu0 0
    %306 = vmatpush1.bf16.msra.mxu0 0
    %307 = vmatprep.subr.bf16.mxu0 0
    %308 = vmatpush1.bf16.msra.mxu0 0
    %309 = vmatprep.mubr.bf16.mxu0 0
    %310 = vmatmul.mubr.bf16.gmra.mrb[0].mxu0 %v275
    %v311 = vpop.f32.mrb[0].mxu0
    %v312 = vadd.f32 %v150, %v311
    %v313 = vpop.f32.mrb[0].mxu0
    %v314 = vadd.f32 %v152, %v313
    %v315 = vpop.f32.mrb[0].mxu0
    %v316 = vadd.f32 %v154, %v315
    %v317 = vpop.f32.mrb[0].mxu0
    %v318 = vadd.f32 %v156, %v317
    %319 = vdwg.mxu0
    %v320 = vld [vmem:[#allocation6] sm:$0x3]
    %v322 = vlaneseq
    %v323 = vshrl.u32 %v322, 7
    %v324 = vsub.s32 0, %v323
    %v325 = vrot.slane %v320, %v324
    %v326 = vlaneseq
    %v327 = vshrl.u32 %v326, 7
    %v328 = vsub.s32 1, %v327
    %v329 = vrot.slane %v320, %v328
    %v332 = vadd.f32 %v312, %v325
    %v333 = vadd.f32 %v314, %v329
    %v334 = vadd.f32 %v316, %v325
    %v335 = vadd.f32 %v318, %v329
    %v336 = vxor.u32 %v332, 2147483648
    %v337 = vxor.u32 %v334, 2147483648
    %v338 = vmul.f32 %v336, 1.442695
    %v339 = vpow.pop %v338
    %v340 = vmul.f32 %v337, 1.442695
    %v341 = vpow.pop %v340
    %v342 = vadd.f32 %v339, 1.0
    %v343 = vadd.f32 %v341, 1.0
    %v344 = vrcp.pop %v342
    %v345 = vmul.f32 1.0, %v344
    %v346 = vrcp.pop %v343
    %v347 = vmul.f32 1.0, %v346
    %v348 = vtanh.pop %v333
    %v349 = vtanh.pop %v335
    %v350 = vmul.f32 %v345, %v348
    %v351 = vmul.f32 %v347, %v349
    %v352 = vtanh.pop %v350
    %v353 = vtanh.pop %v351
    %356 = vrot.lane.b32.xlu0 %v352, 64
    %v357 = vpop.permute.xlu0 %356
    %358 = vrot.lane.b32.xlu0 %v353, 64
    %v359 = vpop.permute.xlu0 %358
    %v362 = vmul.f32 %v345, %v357
    %v363 = vmul.f32 %v347, %v359
    %v364 = vpack.c.bf16 %v363, %v362
    %v365 = vld [vmem:[%s3] sm:$0xff]
    %v366 = vld [vmem:[%s3 + $0x8] sm:$0xff]
    %v367 = vld [vmem:[%s3 + $0x10] sm:$0xff]
    %v368 = vld [vmem:[%s3 + $0x18] sm:$0xff]
    %v369 = vld [vmem:[%s3 + $0x20] sm:$0xff]
    %v370 = vld [vmem:[%s3 + $0x28] sm:$0xff]
    %v371 = vld [vmem:[%s3 + $0x30] sm:$0xff]
    %v372 = vld [vmem:[%s3 + $0x38] sm:$0xff]
    %s373 = scalar_lea.vmem [#allocation6], 2
    %v374 = vld [vmem:[%s373] sm:$0x3]
    %v376 = vlaneseq
    %v377 = vshrl.u32 %v376, 7
    %v378 = vsub.s32 0, %v377
    %v379 = vrot.slane %v374, %v378
    %v380 = vlaneseq
    %v381 = vshrl.u32 %v380, 7
    %v382 = vsub.s32 1, %v381
    %v383 = vrot.slane %v374, %v382
    %387 = vrot.lane.b32.xlu0 %v364, 64
    %v388 = vpop.permute.xlu0 %387
    %v397 = vunpack.c.l.b16 %v365
    %v398 = vunpack.c.h.b16 %v365
    %v399 = vunpack.c.l.b16 %v366
    %v400 = vunpack.c.h.b16 %v366
    %v401 = vunpack.c.l.b16 %v367
    %v402 = vunpack.c.h.b16 %v367
    %v403 = vunpack.c.l.b16 %v368
    %v404 = vunpack.c.h.b16 %v368
    %v405 = vunpack.c.l.b16 %v369
    %v406 = vunpack.c.h.b16 %v369
    %v407 = vunpack.c.l.b16 %v370
    %v408 = vunpack.c.h.b16 %v370
    %v409 = vunpack.c.l.b16 %v371
    %v410 = vunpack.c.h.b16 %v371
    %v411 = vunpack.c.l.b16 %v372
    %v412 = vunpack.c.h.b16 %v372
    %v413 = vpack.c.b16 %v399, %v397
    %v414 = vpack.c.b16 %v400, %v398
    %v415 = vpack.c.b16 %v403, %v401
    %v416 = vpack.c.b16 %v404, %v402
    %v417 = vpack.c.b16 %v407, %v405
    %v418 = vpack.c.b16 %v408, %v406
    %v419 = vpack.c.b16 %v411, %v409
    %v420 = vpack.c.b16 %v412, %v410
    %vm429 = vcmask 523264
    %v431 = vsel %vm429, %v388, 0
    %433 = vmatprep.subr.bf16.mxu0 %v414
    %434 = vmatpush1.bf16.msra.mxu0 %v413
    %435 = vmatprep.subr.bf16.mxu0 %v416
    %436 = vmatpush1.bf16.msra.mxu0 %v415
    %437 = vmatprep.subr.bf16.mxu0 %v418
    %438 = vmatpush1.bf16.msra.mxu0 %v417
    %439 = vmatprep.subr.bf16.mxu0 %v420
    %440 = vmatpush1.bf16.msra.mxu0 %v419
    %441 = vmatprep.subr.bf16.mxu0 0
    %442 = vmatpush1.bf16.msra.mxu0 0
    %443 = vmatprep.subr.bf16.mxu0 0
    %444 = vmatpush1.bf16.msra.mxu0 0
    %445 = vmatprep.subr.bf16.mxu0 0
    %446 = vmatpush1.bf16.msra.mxu0 0
    %447 = vmatprep.subr.bf16.mxu0 0
    %448 = vmatpush1.bf16.msra.mxu0 0
    %449 = vmatprep.subr.bf16.mxu0 0
    %450 = vmatpush1.bf16.msra.mxu0 0
    %451 = vmatprep.subr.bf16.mxu0 0
    %452 = vmatpush1.bf16.msra.mxu0 0
    %453 = vmatprep.subr.bf16.mxu0 0
    %454 = vmatpush1.bf16.msra.mxu0 0
    %455 = vmatprep.subr.bf16.mxu0 0
    %456 = vmatpush1.bf16.msra.mxu0 0
    %457 = vmatprep.subr.bf16.mxu0 0
    %458 = vmatpush1.bf16.msra.mxu0 0
    %459 = vmatprep.subr.bf16.mxu0 0
    %460 = vmatpush1.bf16.msra.mxu0 0
    %461 = vmatprep.subr.bf16.mxu0 0
    %462 = vmatpush1.bf16.msra.mxu0 0
    %463 = vmatprep.subr.bf16.mxu0 0
    %464 = vmatpush1.bf16.msra.mxu0 0
    %465 = vmatprep.mubr.bf16.mxu0 0
    %466 = vmatmul.mubr.bf16.gmra.mrb[0].mxu0 %v431
    %v467 = vpop.f32.mrb[0].mxu0
    %v468 = vadd.f32 %v379, %v467
    %v469 = vpop.f32.mrb[0].mxu0
    %v470 = vadd.f32 %v383, %v469
    %v471 = vpop.f32.mrb[0].mxu0
    %v472 = vadd.f32 %v379, %v471
    %v473 = vpop.f32.mrb[0].mxu0
    %v474 = vadd.f32 %v383, %v473
    %475 = vdwg.mxu0
    %v476 = vxor.u32 %v468, 2147483648
    %v477 = vxor.u32 %v472, 2147483648
    %v478 = vmul.f32 %v476, 1.442695
    %v479 = vpow.pop %v478
    %v480 = vmul.f32 %v477, 1.442695
    %v481 = vpow.pop %v480
    %v482 = vadd.f32 %v479, 1.0
    %v483 = vadd.f32 %v481, 1.0
    %v484 = vrcp.pop %v482
    %v485 = vmul.f32 1.0, %v484
    %v486 = vrcp.pop %v483
    %v487 = vmul.f32 1.0, %v486
    %v488 = vtanh.pop %v470
    %v489 = vtanh.pop %v474
    %v490 = vmul.f32 %v485, %v488
    %v491 = vmul.f32 %v487, %v489
    %v492 = vtanh.pop %v490
    %v493 = vtanh.pop %v491
    %496 = vrot.lane.b32.xlu0 %v492, 64
    %v497 = vpop.permute.xlu0 %496
    %498 = vrot.lane.b32.xlu0 %v493, 64
    %v499 = vpop.permute.xlu0 %498
    %v502 = vmul.f32 %v485, %v497
    %v503 = vmul.f32 %v487, %v499
    %v504 = vpack.c.bf16 %v503, %v502
    %v505 = vld [vmem:[%s5] sm:$0xf]
    %v506 = vld [vmem:[%s5 + $0x4] sm:$0xf]
    %v507 = vld [vmem:[%s5 + $0x8] sm:$0xf]
    %v508 = vld [vmem:[%s5 + $0xc] sm:$0xf]
    %v509 = vld [vmem:[%s5 + $0x10] sm:$0xf]
    %v510 = vld [vmem:[%s5 + $0x14] sm:$0xf]
    %v511 = vld [vmem:[%s5 + $0x18] sm:$0xf]
    %v512 = vld [vmem:[%s5 + $0x1c] sm:$0xf]
    %v513 = vld [vmem:[%s6] sm:$0x1]
    %v515 = vlaneseq
    %v516 = vshrl.u32 %v515, 7
    %v517 = vsub.s32 0, %v516
    %v518 = vrot.slane %v513, %v517
    %521 = vrot.lane.b32.xlu0 %v504, 64
    %v522 = vpop.permute.xlu0 %521
    %v531 = vunpack.c.l.b16 %v505
    %v532 = vunpack.c.l.b16 %v506
    %v533 = vunpack.c.l.b16 %v507
    %v534 = vunpack.c.l.b16 %v508
    %v535 = vunpack.c.l.b16 %v509
    %v536 = vunpack.c.l.b16 %v510
    %v537 = vunpack.c.l.b16 %v511
    %v538 = vunpack.c.l.b16 %v512
    %v539 = vpack.c.b16 %v532, %v531
    %v540 = vpack.c.b16 %v534, %v533
    %v541 = vpack.c.b16 %v536, %v535
    %v542 = vpack.c.b16 %v538, %v537
    %v548 = vsel %vm429, %v522, 0
    %550 = vmatprep.subr.bf16.mxu0 0
    %551 = vmatpush1.bf16.msra.mxu0 %v539
    %552 = vmatprep.subr.bf16.mxu0 0
    %553 = vmatpush1.bf16.msra.mxu0 %v540
    %554 = vmatprep.subr.bf16.mxu0 0
    %555 = vmatpush1.bf16.msra.mxu0 %v541
    %556 = vmatprep.subr.bf16.mxu0 0
    %557 = vmatpush1.bf16.msra.mxu0 %v542
    %558 = vmatprep.subr.bf16.mxu0 0
    %559 = vmatpush1.bf16.msra.mxu0 0
    %560 = vmatprep.subr.bf16.mxu0 0
    %561 = vmatpush1.bf16.msra.mxu0 0
    %562 = vmatprep.subr.bf16.mxu0 0
    %563 = vmatpush1.bf16.msra.mxu0 0
    %564 = vmatprep.subr.bf16.mxu0 0
    %565 = vmatpush1.bf16.msra.mxu0 0
    %566 = vmatprep.subr.bf16.mxu0 0
    %567 = vmatpush1.bf16.msra.mxu0 0
    %568 = vmatprep.subr.bf16.mxu0 0
    %569 = vmatpush1.bf16.msra.mxu0 0
    %570 = vmatprep.subr.bf16.mxu0 0
    %571 = vmatpush1.bf16.msra.mxu0 0
    %572 = vmatprep.subr.bf16.mxu0 0
    %573 = vmatpush1.bf16.msra.mxu0 0
    %574 = vmatprep.subr.bf16.mxu0 0
    %575 = vmatpush1.bf16.msra.mxu0 0
    %576 = vmatprep.subr.bf16.mxu0 0
    %577 = vmatpush1.bf16.msra.mxu0 0
    %578 = vmatprep.subr.bf16.mxu0 0
    %579 = vmatpush1.bf16.msra.mxu0 0
    %580 = vmatprep.subr.bf16.mxu0 0
    %581 = vmatpush1.bf16.msra.mxu0 0
    %582 = vmatprep.mubr.bf16.mxu0 0
    %583 = vmatmul.mubr.bf16.gmra.mrb[0].mxu0 %v548
    %v584 = vpop.f32.mrb[0].mxu0
    %v585 = vadd.f32 %v518, %v584
    %v586 = vpop.f32.mrb[0].mxu0
    %v587 = vpop.f32.mrb[0].mxu0
    %v588 = vadd.f32 %v518, %v587
    %v589 = vpop.f32.mrb[0].mxu0
    %590 = vdwg.mxu0
    %v591 = vxor.u32 %v585, 2147483648
    %v592 = vxor.u32 %v588, 2147483648
    %v593 = vmul.f32 %v591, 1.442695
    %v594 = vpow.pop %v593
    %v595 = vmul.f32 %v592, 1.442695
    %v596 = vpow.pop %v595
    %v597 = vadd.f32 %v594, 1.0
    %v598 = vadd.f32 %v596, 1.0
    %v599 = vrcp.pop %v597
    %v600 = vmul.f32 1.0, %v599
    %v601 = vrcp.pop %v598
    %v602 = vmul.f32 1.0, %v601
    %603 = vst [vmem:[%s7] sm:$0xff] %v600
    %604 = vst [vmem:[%s7 + $0x8] sm:$0xff] %v602
    // Predicated region
    $region42: #{fedp_attn_forward.1} parent=1 // pred_check
      _
    $region43: #{fedp_attn_forward.1} parent=1 // pred_check_branch
      %606 = sbr.rel (0) target = $region45
    $region44: #{fedp_attn_forward.1} parent=1 // pred_region
      _
    $region45: #{fedp_attn_forward.1} parent=1 // pred_fallthru
      _
    // Predicated region
    $region46: #{fedp_attn_forward.1} parent=1 // pred_check
      _
    $region47: #{fedp_attn_forward.1} parent=1 // pred_check_branch
      %608 = sbr.rel (0) target = $region49
    $region48: #{fedp_attn_forward.1} parent=1 // pred_region
      _
    $region49: #{fedp_attn_forward.1} parent=1 // pred_fallthru
      _
    %609 = vsyncpa [#allocation3], 1
    %610 = vsyncpa [#allocation5], 1

</llo_original>
